<compile_context>
chip_gen: v7x
topology: tpu7x:2x2x1
jax: 0.10.0
libtpu: 0.0.40
codegen_flags: <defaults>
</compile_context>

<pallas_src>
import jax
import jax.numpy as jnp
from jax.experimental import pallas as pl
from jax.experimental.pallas import tpu as pltpu


# --------------------------------------------------------------------------------------
# Per-generation VMEM planning
# --------------------------------------------------------------------------------------
def _tpu_generation():
    """Best-effort TPU generation tag: 'v5', 'v6', 'v7', or '' if unknown."""
    kind = ""
    try:
        kind = jax.devices()[0].device_kind.lower()
    except Exception:
        kind = ""
    for tag in ("v7", "v6", "v5"):
        if tag in kind:
            return tag
    # Fallback: v7x has 64 MiB VMEM per TensorCore vs 128 MiB on earlier generations.
    try:
        if int(pltpu.get_tpu_info().vmem_capacity_bytes) <= (64 << 20):
            return "v7"
    except Exception:
        pass
    return ""


def _vmem_plan(gen):
    """Return (per-x-buffer budget bytes, vmem_limit_bytes or None) for a generation."""
    if gen == "v7":   # 64 MiB physical / 32 MiB scoped default: big steps, tight ceiling
        return 7 << 20, 44 << 20
    if gen == "v6":   # 128 MiB physical / 32 MiB scoped default: VMEM is plentiful
        return 10 << 20, 56 << 20
    if gen == "v5":   # 128 MiB physical / 16 MiB scoped default: stay modest
        return 6 << 20, 24 << 20
    return 4 << 20, None  # unknown chip: fit under every generation's scoped default


# --------------------------------------------------------------------------------------
# Kernel builder
# --------------------------------------------------------------------------------------
def _make_kernel(L, C, block_b, block_l, lanewise):
    """Build the kernel + scratch shapes for fixed (L, C, block_b, block_l)."""
    needs_mask = (L % block_l) != 0
    inv_l = 1.0 / float(L)          # divide by the FULL L in the finalize step
    n_lane = block_l // 128

    def _fc_epilogue(avg, mx, w1_ref, w2_ref, out_ref):
        # w1: (Cr, C), w2: (C, Cr) -- PyTorch Linear weights, untransposed.
        w1 = w1_ref[...].astype(jnp.float32)
        w2 = w2_ref[...].astype(jnp.float32)
        dn = (((1,), (1,)), ((), ()))      # contract last dims == v @ W^T, no transpose op

        def fc(v):
            h = jax.lax.dot_general(v, w1, dn, preferred_element_type=jnp.float32)
            h = jnp.maximum(h, 0.0)                                   # ReLU
            o = jax.lax.dot_general(h, w2, dn, preferred_element_type=jnp.float32)
            return jax.nn.sigmoid(o)                                  # Sigmoid (EUP)

        out_ref[...] = fc(fc(avg) + fc(mx)).astype(out_ref.dtype)     # fc applied 3 times

    if lanewise:
        # ---- lane-wide VPU accumulation: (block_b, C, 128) f32 running sum/max ----
        def kernel(x_ref, w1_ref, w2_ref, out_ref, sum_acc, max_acc):
            k = pl.program_id(1)
            last = pl.num_programs(1) - 1

            @pl.when(k == 0)
            def _init():
                sum_acc[...] = jnp.zeros_like(sum_acc)
                max_acc[...] = jnp.full_like(max_acc, -jnp.inf)

            def accum(masked):
                s_acc = sum_acc[...]
                m_acc = max_acc[...]
                for j in range(n_lane):                 # static unroll, 128-lane slices
                    sl = x_ref[:, :, j * 128:(j + 1) * 128].astype(jnp.float32)
                    if masked:                          # f32 masking: safe for any dtype
                        pos = (k * block_l + j * 128
                               + jax.lax.broadcasted_iota(jnp.int32, (1, 1, 128), 2))
                        valid = pos < L
                        s = jnp.where(valid, sl, 0.0)
                        m = jnp.where(valid, sl, -jnp.inf)
                    else:
                        s = sl
                        m = sl
                    s_acc = s_acc + s
                    m_acc = jnp.maximum(m_acc, m)
                sum_acc[...] = s_acc
                max_acc[...] = m_acc

            if needs_mask:
                @pl.when(k < last)          # hot path: pure load + accumulate, no mask
                def _hot():
                    accum(False)

                @pl.when(k == last)         # cold tail: masked accumulate, last tile only
                def _tail():
                    accum(True)
            else:
                accum(False)

            @pl.when(k == last)
            def _finalize():
                avg = jnp.sum(sum_acc[...], axis=-1) * inv_l   # single XLU reduce
                mx = jnp.max(max_acc[...], axis=-1)            # single XLU reduce
                _fc_epilogue(avg, mx, w1_ref, w2_ref, out_ref)

        scratch = [pltpu.VMEM((block_b, C, 128), jnp.float32),
                   pltpu.VMEM((block_b, C, 128), jnp.float32)]
    else:
        # ---- simple path: per-tile cross-lane reduce into (block_b, C) f32 scratch ----
        def kernel(x_ref, w1_ref, w2_ref, out_ref, sum_acc, max_acc):
            k = pl.program_id(1)
            last = pl.num_programs(1) - 1

            @pl.when(k == 0)
            def _init():
                sum_acc[...] = jnp.zeros_like(sum_acc)
                max_acc[...] = jnp.full_like(max_acc, -jnp.inf)

            def accum(masked):
                tile = x_ref[...]
                if masked:
                    t = tile.astype(jnp.float32)        # f32 masking (cold, last tile only)
                    pos = (k * block_l
                           + jax.lax.broadcasted_iota(jnp.int32, (1, 1, block_l), 2))
                    valid = pos < L
                    s = jnp.where(valid, t, 0.0)
                    m = jnp.where(valid, t, -jnp.inf)
                    sum_acc[...] += jnp.sum(s, axis=-1)
                    max_acc[...] = jnp.maximum(max_acc[...], jnp.max(m, axis=-1))
                else:
                    sum_acc[...] += jnp.sum(tile, axis=-1, dtype=jnp.float32)
                    max_acc[...] = jnp.maximum(
                        max_acc[...], jnp.max(tile, axis=-1).astype(jnp.float32))

            if needs_mask:
                @pl.when(k < last)
                def _hot():
                    accum(False)

                @pl.when(k == last)
                def _tail():
                    accum(True)
            else:
                accum(False)

            @pl.when(k == last)
            def _finalize():
                avg = sum_acc[...] * inv_l
                mx = max_acc[...]
                _fc_epilogue(avg, mx, w1_ref, w2_ref, out_ref)

        scratch = [pltpu.VMEM((block_b, C), jnp.float32),
                   pltpu.VMEM((block_b, C), jnp.float32)]

    return kernel, scratch


# --------------------------------------------------------------------------------------
# Wrapper
# --------------------------------------------------------------------------------------
def channel_attention(x, w1, w2, *, block_b=None, block_l=None):
    """x: (B, C, L); w1: (Cr, C); w2: (C, Cr)  (PyTorch Linear weight layout, untransposed).
    Returns (B, C, 1) channel-attention weights."""
    B, C, L = x.shape
    Cr, C1 = w1.shape
    assert C1 == C and w2.shape == (C, Cr)
    itemsize = jnp.dtype(x.dtype).itemsize

    gen = _tpu_generation()
    budget, vmem_limit = _vmem_plan(gen)

    # ---- block_b: full B if small; else multiples of 8 sized so a full-L tile fills the
    # per-step byte budget (review: >=2-4 MiB per grid step when C is small).
    if block_b is None:
        if B <= 8:
            block_b = B
        else:
            per_b_full = C * L * itemsize
            ideal = max(1, budget // max(per_b_full, 1))
            block_b = int(min(B, max(8, (ideal // 8) * 8)))
            if gen == "v7" and B >= 16:
                # keep >= 2 B-blocks so the second TensorCore (megacore) has work
                block_b = int(min(block_b, 8 * pl.cdiv(B, 16)))

    # ---- block_l: prefer the full, fully-contiguous L row (no mask, no strided DMA,
    # single reduction step) whenever it fits the budget; otherwise the largest multiple
    # of 128 under the budget (capped so the lane-accumulate loop stays a short unroll).
    if block_l is None:
        if block_b * C * L * itemsize <= budget:
            block_l = L
        else:
            bl = (budget // (block_b * C * itemsize) // 128) * 128
            block_l = int(min(L, max(128, bl), 64 * 128))

    # Lane-wide VPU accumulation only when slices are 128-aligned, the static unroll is
    # short, and the (block_b, C, 128) f32 x2 scratch stays small.
    lanewise = (block_l % 128 == 0
                and block_l // 128 <= 64
                and block_b * C * 128 * 4 * 2 <= (4 << 20))

    grid = (pl.cdiv(B, block_b), pl.cdiv(L, block_l))
    kernel, scratch_shapes = _make_kernel(L, C, block_b, block_l, lanewise)

    cost = pl.CostEstimate(
        flops=int(2 * B * C * L + 12 * B * C * Cr),        # pooling + 3x(two tiny matmuls)
        transcendentals=int(3 * B * C),                    # 3 sigmoids
        bytes_accessed=int(B * C * L * itemsize            # stream x once
                           + B * C * itemsize              # output
                           + 2 * Cr * C * jnp.dtype(w1.dtype).itemsize),
    )

    cp_kwargs = dict(dimension_semantics=("parallel", "arbitrary"))  # B parallel, L reduce
    if vmem_limit is not None:
        cp_kwargs["vmem_limit_bytes"] = int(vmem_limit)

    out = pl.pallas_call(
        kernel,
        out_shape=jax.ShapeDtypeStruct((B, C), x.dtype),
        grid_spec=pltpu.PrefetchScalarGridSpec(
            num_scalar_prefetch=0,
            grid=grid,
            in_specs=[
                pl.BlockSpec((block_b, C, block_l), lambda i, k: (i, 0, k)),  # x tiles
                pl.BlockSpec((Cr, C), lambda i, k: (0, 0)),                   # W1 resident
                pl.BlockSpec((C, Cr), lambda i, k: (0, 0)),                   # W2 resident
            ],
            out_specs=pl.BlockSpec((block_b, C), lambda i, k: (i, 0)),
            scratch_shapes=scratch_shapes,
        ),
        compiler_params=pltpu.CompilerParams(**cp_kwargs),
        cost_estimate=cost,
    )(x, w1, w2)

    return out[:, :, None]  # .unsqueeze(-1)


# --------------------------------------------------------------------------------------
# Self-test
# --------------------------------------------------------------------------------------
if __name__ == "__main__":
    key = jax.random.PRNGKey(0)

    def reference(x, w1, w2):
        def fc(v):
            return jax.nn.sigmoid(jnp.maximum(v @ w1.T, 0.0) @ w2.T)
        return fc(fc(jnp.mean(x, axis=-1)) + fc(jnp.max(x, axis=-1)))[:, :, None]

    # Case 1: shapes consistent with the module (batch=2, channels=32, seq_len=16).
    B, C, L = 2, 32, 16
    reduction_ratio = 16
    Cr = max(1, C // reduction_ratio)

    kx, k1, k2, key = jax.random.split(key, 4)
    x = jax.random.normal(kx, (B, C, L), dtype=jnp.float32)
    bound1 = 1.0 / (C ** 0.5)
    bound2 = 1.0 / (Cr ** 0.5)
    w1 = jax.random.uniform(k1, (Cr, C), minval=-bound1, maxval=bound1, dtype=jnp.float32)
    w2 = jax.random.uniform(k2, (C, Cr), minval=-bound2, maxval=bound2, dtype=jnp.float32)

    out = channel_attention(x, w1, w2)
    jax.block_until_ready(out)
    assert out.shape == (B, C, 1)
    assert jnp.allclose(out, reference(x, w1, w2), atol=1e-5, rtol=1e-5)

    # Case 2: force the multi-tile / masked-last-tile / lane-accumulate path.
    B2, C2, L2 = 4, 32, 300
    kx2, key = jax.random.split(key)
    x2 = jax.random.normal(kx2, (B2, C2, L2), dtype=jnp.float32)
    out2 = channel_attention(x2, w1, w2, block_b=4, block_l=128)
    jax.block_until_ready(out2)
    assert out2.shape == (B2, C2, 1)
    assert jnp.allclose(out2, reference(x2, w1, w2), atol=1e-5, rtol=1e-5)

    print("KERNEL_OK")
</pallas_src>

<mosaic_0001>
module attributes {stable_mosaic.version = 11 : i64} {
  func.func @kernel(%arg0: i32, %arg1: i32, %arg2: memref<2x32x16xf32, #tpu.memory_space<vmem>>, %arg3: memref<2x32xf32, #tpu.memory_space<vmem>>, %arg4: memref<32x2xf32, #tpu.memory_space<vmem>>, %arg5: memref<2x32xf32, #tpu.memory_space<vmem>>, %arg6: memref<2x32xf32, #tpu.memory_space<vmem>>, %arg7: memref<2x32xf32, #tpu.memory_space<vmem>>) attributes {dimension_semantics = [#tpu.dimension_semantics<parallel>, #tpu.dimension_semantics<arbitrary>], iteration_bounds = array<i64: 1, 1>, scalar_prefetch = 0 : i64, scratch_operands = 2 : i64, tpu.core_type = #tpu.core_type<tc>, window_params = [{transform_indices = @transform_0, window_bounds = array<i64: 2, 32, 16>}, {pipeline_mode = #tpu.pipeline_mode<synchronous>, transform_indices = @transform_1, window_bounds = array<i64: 2, 32>}, {pipeline_mode = #tpu.pipeline_mode<synchronous>, transform_indices = @transform_2, window_bounds = array<i64: 32, 2>}, {transform_indices = @transform_3, window_bounds = array<i64: 2, 32>}]} {
    %c0_i32 = arith.constant 0 : i32
    %0 = arith.cmpi eq, %arg1, %c0_i32 : i32
    %1 = arith.extui %0 : i1 to i32
    %c0_i32_0 = arith.constant 0 : i32
    %2 = arith.cmpi ne, %1, %c0_i32_0 : i32
    scf.if %2 {
      %cst_14 = arith.constant 0.000000e+00 : f32
      %15 = vector.broadcast %cst_14 : f32 to vector<2x32xf32>
      %c0_15 = arith.constant 0 : index
      %c0_16 = arith.constant 0 : index
      %16 = vector.load %arg6[%c0_15, %c0_16] : memref<2x32xf32, #tpu.memory_space<vmem>>, vector<2x32xf32>
      tpu.vector_store %arg6[%c0_15, %c0_16], %15 {strides = array<i32>} : memref<2x32xf32, #tpu.memory_space<vmem>>, vector<2x32xf32>,
      %cst_17 = arith.constant 0xFF800000 : f32
      %17 = vector.broadcast %cst_17 : f32 to vector<2x32xf32>
      %c0_18 = arith.constant 0 : index
      %c0_19 = arith.constant 0 : index
      %18 = vector.load %arg7[%c0_18, %c0_19] : memref<2x32xf32, #tpu.memory_space<vmem>>, vector<2x32xf32>
      tpu.vector_store %arg7[%c0_18, %c0_19], %17 {strides = array<i32>} : memref<2x32xf32, #tpu.memory_space<vmem>>, vector<2x32xf32>,
    } else {
    }
    %c0 = arith.constant 0 : index
    %c0_1 = arith.constant 0 : index
    %c0_2 = arith.constant 0 : index
    %3 = vector.load %arg2[%c0, %c0_1, %c0_2] : memref<2x32x16xf32, #tpu.memory_space<vmem>>, vector<2x32x16xf32>
    %c0_3 = arith.constant 0 : index
    %c0_4 = arith.constant 0 : index
    %4 = vector.load %arg6[%c0_3, %c0_4] : memref<2x32xf32, #tpu.memory_space<vmem>>, vector<2x32xf32>
    %cst = arith.constant dense<0.000000e+00> : vector<2x32xf32>
    %5 = vector.multi_reduction <add>, %3, %cst [2] : vector<2x32x16xf32> to vector<2x32xf32>
    %6 = arith.addf %4, %5 : vector<2x32xf32>
    %c0_5 = arith.constant 0 : index
    %c0_6 = arith.constant 0 : index
    %7 = vector.load %arg6[%c0_5, %c0_6] : memref<2x32xf32, #tpu.memory_space<vmem>>, vector<2x32xf32>
    tpu.vector_store %arg6[%c0_5, %c0_6], %6 {strides = array<i32>} : memref<2x32xf32, #tpu.memory_space<vmem>>, vector<2x32xf32>,
    %c0_7 = arith.constant 0 : index
    %c0_8 = arith.constant 0 : index
    %8 = vector.load %arg7[%c0_7, %c0_8] : memref<2x32xf32, #tpu.memory_space<vmem>>, vector<2x32xf32>
    %cst_9 = arith.constant dense<0xFF800000> : vector<2x32xf32>
    %9 = vector.multi_reduction <maximumf>, %3, %cst_9 [2] : vector<2x32x16xf32> to vector<2x32xf32>
    %10 = arith.maximumf %8, %9 : vector<2x32xf32>
    %c0_10 = arith.constant 0 : index
    %c0_11 = arith.constant 0 : index
    %11 = vector.load %arg7[%c0_10, %c0_11] : memref<2x32xf32, #tpu.memory_space<vmem>>, vector<2x32xf32>
    tpu.vector_store %arg7[%c0_10, %c0_11], %10 {strides = array<i32>} : memref<2x32xf32, #tpu.memory_space<vmem>>, vector<2x32xf32>,
    %c0_i32_12 = arith.constant 0 : i32
    %12 = arith.cmpi eq, %arg1, %c0_i32_12 : i32
    %13 = arith.extui %12 : i1 to i32
    %c0_i32_13 = arith.constant 0 : i32
    %14 = arith.cmpi ne, %13, %c0_i32_13 : i32
    scf.if %14 {
      %c0_14 = arith.constant 0 : index
      %c0_15 = arith.constant 0 : index
      %15 = vector.load %arg6[%c0_14, %c0_15] : memref<2x32xf32, #tpu.memory_space<vmem>>, vector<2x32xf32>
      %cst_16 = arith.constant 6.250000e-02 : f32
      %16 = vector.broadcast %cst_16 : f32 to vector<2x32xf32>
      %17 = arith.mulf %15, %16 : vector<2x32xf32>
      %c0_17 = arith.constant 0 : index
      %c0_18 = arith.constant 0 : index
      %18 = vector.load %arg7[%c0_17, %c0_18] : memref<2x32xf32, #tpu.memory_space<vmem>>, vector<2x32xf32>
      %c0_19 = arith.constant 0 : index
      %c0_20 = arith.constant 0 : index
      %19 = vector.load %arg3[%c0_19, %c0_20] : memref<2x32xf32, #tpu.memory_space<vmem>>, vector<2x32xf32>
      %c0_21 = arith.constant 0 : index
      %c0_22 = arith.constant 0 : index
      %20 = vector.load %arg4[%c0_21, %c0_22] : memref<32x2xf32, #tpu.memory_space<vmem>>, vector<32x2xf32>
      %cst_23 = arith.constant dense<0.000000e+00> : vector<2x2xf32>
      %21 = tpu.matmul %17, %19, %cst_23 {dimension_numbers = #tpu.dot_dimension_numbers<[1], [1], [0], [0], [0, 0, 1, 0], [], []>} : vector<2x32xf32>, vector<2x32xf32>, vector<2x2xf32> -> vector<2x2xf32>
      %cst_24 = arith.constant 0.000000e+00 : f32
      %22 = vector.broadcast %cst_24 : f32 to vector<2x2xf32>
      %23 = arith.maximumf %21, %22 : vector<2x2xf32>
      %cst_25 = arith.constant dense<0.000000e+00> : vector<2x32xf32>
      %24 = tpu.matmul %23, %20, %cst_25 {dimension_numbers = #tpu.dot_dimension_numbers<[1], [1], [0], [0], [0, 0, 1, 0], [], []>} : vector<2x2xf32>, vector<32x2xf32>, vector<2x32xf32> -> vector<2x32xf32>
      %25 = arith.negf %24 : vector<2x32xf32>
      %26 = math.exp %25 : vector<2x32xf32>
      %cst_26 = arith.constant 1.000000e+00 : f32
      %27 = vector.broadcast %cst_26 : f32 to vector<2x32xf32>
      %28 = arith.addf %27, %26 : vector<2x32xf32>
      %29 = arith.divf %27, %28 : vector<2x32xf32>
      %cst_27 = arith.constant dense<0.000000e+00> : vector<2x2xf32>
      %30 = tpu.matmul %18, %19, %cst_27 {dimension_numbers = #tpu.dot_dimension_numbers<[1], [1], [0], [0], [0, 0, 1, 0], [], []>} : vector<2x32xf32>, vector<2x32xf32>, vector<2x2xf32> -> vector<2x2xf32>
      %cst_28 = arith.constant 0.000000e+00 : f32
      %31 = vector.broadcast %cst_28 : f32 to vector<2x2xf32>
      %32 = arith.maximumf %30, %31 : vector<2x2xf32>
      %cst_29 = arith.constant dense<0.000000e+00> : vector<2x32xf32>
      %33 = tpu.matmul %32, %20, %cst_29 {dimension_numbers = #tpu.dot_dimension_numbers<[1], [1], [0], [0], [0, 0, 1, 0], [], []>} : vector<2x2xf32>, vector<32x2xf32>, vector<2x32xf32> -> vector<2x32xf32>
      %34 = arith.negf %33 : vector<2x32xf32>
      %35 = math.exp %34 : vector<2x32xf32>
      %cst_30 = arith.constant 1.000000e+00 : f32
      %36 = vector.broadcast %cst_30 : f32 to vector<2x32xf32>
      %37 = arith.addf %36, %35 : vector<2x32xf32>
      %38 = arith.divf %36, %37 : vector<2x32xf32>
      %39 = arith.addf %29, %38 : vector<2x32xf32>
      %cst_31 = arith.constant dense<0.000000e+00> : vector<2x2xf32>
      %40 = tpu.matmul %39, %19, %cst_31 {dimension_numbers = #tpu.dot_dimension_numbers<[1], [1], [0], [0], [0, 0, 1, 0], [], []>} : vector<2x32xf32>, vector<2x32xf32>, vector<2x2xf32> -> vector<2x2xf32>
      %cst_32 = arith.constant 0.000000e+00 : f32
      %41 = vector.broadcast %cst_32 : f32 to vector<2x2xf32>
      %42 = arith.maximumf %40, %41 : vector<2x2xf32>
      %cst_33 = arith.constant dense<0.000000e+00> : vector<2x32xf32>
      %43 = tpu.matmul %42, %20, %cst_33 {dimension_numbers = #tpu.dot_dimension_numbers<[1], [1], [0], [0], [0, 0, 1, 0], [], []>} : vector<2x2xf32>, vector<32x2xf32>, vector<2x32xf32> -> vector<2x32xf32>
      %44 = arith.negf %43 : vector<2x32xf32>
      %45 = math.exp %44 : vector<2x32xf32>
      %cst_34 = arith.constant 1.000000e+00 : f32
      %46 = vector.broadcast %cst_34 : f32 to vector<2x32xf32>
      %47 = arith.addf %46, %45 : vector<2x32xf32>
      %48 = arith.divf %46, %47 : vector<2x32xf32>
      %c0_35 = arith.constant 0 : index
      %c0_36 = arith.constant 0 : index
      %49 = vector.load %arg5[%c0_35, %c0_36] : memref<2x32xf32, #tpu.memory_space<vmem>>, vector<2x32xf32>
      tpu.vector_store %arg5[%c0_35, %c0_36], %48 {strides = array<i32>} : memref<2x32xf32, #tpu.memory_space<vmem>>, vector<2x32xf32>,
    } else {
    }
    return
  }
  func.func @transform_0(%arg0: i32, %arg1: i32) -> (i32, i32, i32) {
    %c0_i32 = arith.constant 0 : i32
    %c0_i32_0 = arith.constant 0 : i32
    return %arg0, %c0_i32, %arg1 : i32, i32, i32
  }
  func.func @transform_1(%arg0: i32, %arg1: i32) -> (i32, i32) {
    %c0_i32 = arith.constant 0 : i32
    %c0_i32_0 = arith.constant 0 : i32
    %c0_i32_1 = arith.constant 0 : i32
    return %c0_i32, %c0_i32_0 : i32, i32
  }
  func.func @transform_2(%arg0: i32, %arg1: i32) -> (i32, i32) {
    %c0_i32 = arith.constant 0 : i32
    %c0_i32_0 = arith.constant 0 : i32
    %c0_i32_1 = arith.constant 0 : i32
    return %c0_i32, %c0_i32_0 : i32, i32
  }
  func.func @transform_3(%arg0: i32, %arg1: i32) -> (i32, i32) {
    %c0_i32 = arith.constant 0 : i32
    %c0_i32_0 = arith.constant 0 : i32
    return %arg0, %c0_i32 : i32, i32
  }
}

</mosaic_0001>

<llo_original>
// kernel: tpu_custom_call.1
$region0: #{tpu_custom_call.1}
  #allocation0 [shape = 'u32[]', space=smem, size = 0x4, offset = 0x4, fixed_abs, tag = 'smem constant byte address 0x4 - core index']
  #allocation1 [shape = 'u32[144,128]{1,0:T(1,128)}', space=vmem, size = 0x12000, scoped, tag = 'internal scratch']
  #allocation2 [shape = 'f32[2,32]{1,0:T(2,128)}', space=vmem, size = 0x400, scoped, tag = 'scratch operand']
  #allocation3 [shape = 'f32[2,32]{1,0:T(2,128)}', space=vmem, size = 0x400, scoped, tag = 'scratch operand']
  %s0 = inlined_call_operand.vmem [shape: f32[2,32,16], index: 0, kind: input, shape index: {}]
  %s1 = inlined_call_operand.vmem [shape: f32[2,32], index: 1, kind: input, shape index: {}]
  %s2 = inlined_call_operand.vmem [shape: f32[32,2], index: 2, kind: input, shape index: {}]
  %s3 = inlined_call_operand.hbm [shape: f32[2,32], index: 3, kind: output, shape index: {}]
  %s4 = sld [smem:[#allocation0]]
  $region30: #{tpu_custom_call.1} parent=0
    _
  %s6 = ssub.s32 1, %s4
  %s7 = scalar_select 0, %s6, %s4
  $region1: #{tpu_custom_call.1} parent=0
    #allocation4 [shape = 'u8[1024]{0}', space=vmem, size = 0x400, scoped, tag = 'output window, operand 0, single buffered']
    #allocation5 [shape = 's32[1]{0}', space=sflag, size = 0x4, scoped, tag = 'scoped memory for tpu_custom_call.1']
    %8 = vsyncpa [#allocation5], 0
    // Predicated region
    $region2: #{tpu_custom_call.1} parent=1 // pred_check
      _
    $region3: #{tpu_custom_call.1} parent=1 // pred_check_branch
      %10 = sbr.rel (0) target = $region5
    $region4: #{tpu_custom_call.1} parent=1 // pred_region
      _
    $region5: #{tpu_custom_call.1} parent=1 // pred_fallthru
      _
    // Predicated region
    $region6: #{tpu_custom_call.1} parent=1 // pred_check
      _
    $region7: #{tpu_custom_call.1} parent=1 // pred_check_branch
      %12 = sbr.rel (0) target = $region9
    $region8: #{tpu_custom_call.1} parent=1 // pred_region
      _
    $region9: #{tpu_custom_call.1} parent=1 // pred_fallthru
      _
    // Predicated region
    $region10: #{tpu_custom_call.1} parent=1 // pred_check
      _
    $region11: #{tpu_custom_call.1} parent=1 // pred_check_branch
      %14 = sbr.rel (0) target = $region13
    $region12: #{tpu_custom_call.1} parent=1 // pred_region
      _
    $region13: #{tpu_custom_call.1} parent=1 // pred_fallthru
      _
    %p15 = scmp.eq.s32.totalorder 0, 0
    // Predicated region
    $region14: #{tpu_custom_call.1} parent=1 // pred_check
      %p16 = pneg %p15
    $region15: #{tpu_custom_call.1} parent=1 // pred_check_branch
      %18 = sbr.rel (%p16) target = $region17
    $region16: #{tpu_custom_call.1} parent=1 // pred_region
      %vm19 = vcmask 254976
      %20 = vst.msk [vmem:[#allocation2] sm:$0x3] %vm19, 0.0
      %21 = vst.msk [vmem:[#allocation3] sm:$0x3] %vm19, -inf
    $region17: #{tpu_custom_call.1} parent=1 // pred_fallthru
      _
    %v22 = vld [vmem:[%s0] sm:$0xff]
    %v23 = vld [vmem:[%s0 + $0x8] sm:$0xff]
    %v24 = vld [vmem:[%s0 + $0x10] sm:$0xff]
    %v25 = vld [vmem:[%s0 + $0x18] sm:$0xff]
    %v26 = vld [vmem:[%s0 + $0x20] sm:$0xff]
    %v27 = vld [vmem:[%s0 + $0x28] sm:$0xff]
    %v28 = vld [vmem:[%s0 + $0x30] sm:$0xff]
    %v29 = vld [vmem:[%s0 + $0x38] sm:$0xff]
    %v30 = vld [vmem:[#allocation2] sm:$0x3]
    %vm31 = vcmask 130048
    %v32 = vsel %vm31, %v22, 0.0
    %33 = vadd.xlane.f32.xlu0 %v32
    %v34 = vpop.xlane.xlu0 %33
    %v35 = vsel %vm31, %v23, 0.0
    %36 = vadd.xlane.f32.xlu0 %v35
    %v37 = vpop.xlane.xlu0 %36
    %v38 = vsel %vm31, %v24, 0.0
    %39 = vadd.xlane.f32.xlu0 %v38
    %v40 = vpop.xlane.xlu0 %39
    %v41 = vsel %vm31, %v25, 0.0
    %42 = vadd.xlane.f32.xlu0 %v41
    %v43 = vpop.xlane.xlu0 %42
    %v44 = vsel %vm31, %v26, 0.0
    %45 = vadd.xlane.f32.xlu0 %v44
    %v46 = vpop.xlane.xlu0 %45
    %v47 = vsel %vm31, %v27, 0.0
    %48 = vadd.xlane.f32.xlu0 %v47
    %v49 = vpop.xlane.xlu0 %48
    %v50 = vsel %vm31, %v28, 0.0
    %51 = vadd.xlane.f32.xlu0 %v50
    %v52 = vpop.xlane.xlu0 %51
    %v53 = vsel %vm31, %v29, 0.0
    %54 = vadd.xlane.f32.xlu0 %v53
    %v55 = vpop.xlane.xlu0 %54
    %v64 = vlaneseq
    %v65 = vand.u32 %v64, 127
    %v66 = vlaneseq
    %v67 = vshrl.u32 %v66, 7
    %v68 = vsub.s32 %v65, %v67
    %v69 = vrot.slane %v34, %v68
    %v70 = vadd.s32 %v65, 4294967288
    %v71 = vlaneseq
    %v72 = vshrl.u32 %v71, 7
    %v73 = vsub.s32 %v70, %v72
    %v74 = vrot.slane %v37, %v73
    %vm75 = vcmask 130112
    %v76 = vsel %vm75, %v74, %v69
    %v77 = vadd.s32 %v65, 4294967280
    %v78 = vlaneseq
    %v79 = vshrl.u32 %v78, 7
    %v80 = vsub.s32 %v77, %v79
    %v81 = vrot.slane %v40, %v80
    %vm82 = vcmask 195712
    %v83 = vsel %vm82, %v81, %v76
    %v84 = vadd.s32 %v65, 4294967272
    %v85 = vlaneseq
    %v86 = vshrl.u32 %v85, 7
    %v87 = vsub.s32 %v84, %v86
    %v88 = vrot.slane %v43, %v87
    %vm89 = vcmask 261312
    %v90 = vsel %vm89, %v88, %v83
    %v91 = vlaneseq
    %v92 = vshrl.u32 %v91, 7
    %v93 = vsub.s32 %v65, %v92
    %v94 = vrot.slane %v46, %v93
    %v95 = vlaneseq
    %v96 = vshrl.u32 %v95, 7
    %v97 = vsub.s32 %v70, %v96
    %v98 = vrot.slane %v49, %v97
    %v99 = vsel %vm75, %v98, %v94
    %v100 = vlaneseq
    %v101 = vshrl.u32 %v100, 7
    %v102 = vsub.s32 %v77, %v101
    %v103 = vrot.slane %v52, %v102
    %v104 = vsel %vm82, %v103, %v99
    %v105 = vlaneseq
    %v106 = vshrl.u32 %v105, 7
    %v107 = vsub.s32 %v84, %v106
    %v108 = vrot.slane %v55, %v107
    %v109 = vsel %vm89, %v108, %v104
    %vm110 = vcmask 1041409
    %v111 = vsel %vm110, %v109, %v90
    %v113 = vadd.f32 %v30, %v111
    %vm114 = vcmask 254976
    %115 = vst.msk [vmem:[#allocation2] sm:$0x3] %vm114, %v113
    %v116 = vld [vmem:[#allocation3] sm:$0x3]
    %v117 = vsel %vm31, %v22, -inf
    %118 = vmax.xlane.f32.xlu0 %v117
    %v119 = vpop.xlane.xlu0 %118
    %v120 = vsel %vm31, %v23, -inf
    %121 = vmax.xlane.f32.xlu0 %v120
    %v122 = vpop.xlane.xlu0 %121
    %v123 = vsel %vm31, %v24, -inf
    %124 = vmax.xlane.f32.xlu0 %v123
    %v125 = vpop.xlane.xlu0 %124
    %v126 = vsel %vm31, %v25, -inf
    %127 = vmax.xlane.f32.xlu0 %v126
    %v128 = vpop.xlane.xlu0 %127
    %v129 = vsel %vm31, %v26, -inf
    %130 = vmax.xlane.f32.xlu0 %v129
    %v131 = vpop.xlane.xlu0 %130
    %v132 = vsel %vm31, %v27, -inf
    %133 = vmax.xlane.f32.xlu0 %v132
    %v134 = vpop.xlane.xlu0 %133
    %v135 = vsel %vm31, %v28, -inf
    %136 = vmax.xlane.f32.xlu0 %v135
    %v137 = vpop.xlane.xlu0 %136
    %v138 = vsel %vm31, %v29, -inf
    %139 = vmax.xlane.f32.xlu0 %v138
    %v140 = vpop.xlane.xlu0 %139
    %v149 = vlaneseq
    %v150 = vshrl.u32 %v149, 7
    %v151 = vsub.s32 %v65, %v150
    %v152 = vrot.slane %v119, %v151
    %v153 = vlaneseq
    %v154 = vshrl.u32 %v153, 7
    %v155 = vsub.s32 %v70, %v154
    %v156 = vrot.slane %v122, %v155
    %v157 = vsel %vm75, %v156, %v152
    %v158 = vlaneseq
    %v159 = vshrl.u32 %v158, 7
    %v160 = vsub.s32 %v77, %v159
    %v161 = vrot.slane %v125, %v160
    %v162 = vsel %vm82, %v161, %v157
    %v163 = vlaneseq
    %v164 = vshrl.u32 %v163, 7
    %v165 = vsub.s32 %v84, %v164
    %v166 = vrot.slane %v128, %v165
    %v167 = vsel %vm89, %v166, %v162
    %v168 = vlaneseq
    %v169 = vshrl.u32 %v168, 7
    %v170 = vsub.s32 %v65, %v169
    %v171 = vrot.slane %v131, %v170
    %v172 = vlaneseq
    %v173 = vshrl.u32 %v172, 7
    %v174 = vsub.s32 %v70, %v173
    %v175 = vrot.slane %v134, %v174
    %v176 = vsel %vm75, %v175, %v171
    %v177 = vlaneseq
    %v178 = vshrl.u32 %v177, 7
    %v179 = vsub.s32 %v77, %v178
    %v180 = vrot.slane %v137, %v179
    %v181 = vsel %vm82, %v180, %v176
    %v182 = vlaneseq
    %v183 = vshrl.u32 %v182, 7
    %v184 = vsub.s32 %v84, %v183
    %v185 = vrot.slane %v140, %v184
    %v186 = vsel %vm89, %v185, %v181
    %v187 = vsel %vm110, %v186, %v167
    %v189 = vmax.f32 %v116, %v187
    %190 = vst.msk [vmem:[#allocation3] sm:$0x3] %vm114, %v189
    // Predicated region
    $region18: #{tpu_custom_call.1} parent=1 // pred_check
      %p191 = pneg %p15
    $region19: #{tpu_custom_call.1} parent=1 // pred_check_branch
      %193 = sbr.rel (%p191) target = $region21
    $region20: #{tpu_custom_call.1} parent=1 // pred_region
      %v194 = vld [vmem:[#allocation2] sm:$0x3]
      %v195 = vmul.f32 %v194, 0.0625
      %v196 = vld [vmem:[#allocation3] sm:$0x3]
      %v197 = vld [vmem:[%s1] sm:$0x3]
      %v198 = vld [vmem:[%s2] sm:$0xff]
      %v199 = vld [vmem:[%s2 + $0x8] sm:$0xff]
      %v200 = vld [vmem:[%s2 + $0x10] sm:$0xff]
      %v201 = vld [vmem:[%s2 + $0x18] sm:$0xff]
      %vm202 = vcmask 261120
      %v204 = vsel %vm202, %v195, 0
      %v207 = vsel %vm202, %v197, 0
      %209 = vmatprep.subr.mxu0 0.0
      %210 = vmatpush1.xpose.msra.mxu0 %v207
      %211 = vmatprep.subr.mxu0 0.0
      %212 = vmatpush1.xpose.msra.mxu0 0.0
      %213 = vmatprep.subr.mxu0 0.0
      %214 = vmatpush1.xpose.msra.mxu0 0.0
      %215 = vmatprep.subr.mxu0 0.0
      %216 = vmatpush1.xpose.msra.mxu0 0.0
      %217 = vmatprep.subr.mxu0 0.0
      %218 = vmatpush1.xpose.msra.mxu0 0.0
      %219 = vmatprep.subr.mxu0 0.0
      %220 = vmatpush1.xpose.msra.mxu0 0.0
      %221 = vmatprep.subr.mxu0 0.0
      %222 = vmatpush1.xpose.msra.mxu0 0.0
      %223 = vmatprep.subr.mxu0 0.0
      %224 = vmatpush1.xpose.msra.mxu0 0.0
      %225 = vmatprep.subr.mxu0 0.0
      %226 = vmatpush1.xpose.msra.mxu0 0.0
      %227 = vmatprep.subr.mxu0 0.0
      %228 = vmatpush1.xpose.msra.mxu0 0.0
      %229 = vmatprep.subr.mxu0 0.0
      %230 = vmatpush1.xpose.msra.mxu0 0.0
      %231 = vmatprep.subr.mxu0 0.0
      %232 = vmatpush1.xpose.msra.mxu0 0.0
      %233 = vmatprep.subr.mxu0 0.0
      %234 = vmatpush1.xpose.msra.mxu0 0.0
      %235 = vmatprep.subr.mxu0 0.0
      %236 = vmatpush1.xpose.msra.mxu0 0.0
      %237 = vmatprep.subr.mxu0 0.0
      %238 = vmatpush1.xpose.msra.mxu0 0.0
      %239 = vmatprep.subr.mxu0 0.0
      %240 = vmatpush1.xpose.msra.mxu0 0.0
      %241 = vmatprep.subr.mxu0 0.0
      %242 = vmatpush1.xpose.msra.mxu0 0.0
      %243 = vmatprep.subr.mxu0 0.0
      %244 = vmatpush1.xpose.msra.mxu0 0.0
      %245 = vmatprep.subr.mxu0 0.0
      %246 = vmatpush1.xpose.msra.mxu0 0.0
      %247 = vmatprep.subr.mxu0 0.0
      %248 = vmatpush1.xpose.msra.mxu0 0.0
      %249 = vmatprep.subr.mxu0 0.0
      %250 = vmatpush1.xpose.msra.mxu0 0.0
      %251 = vmatprep.subr.mxu0 0.0
      %252 = vmatpush1.xpose.msra.mxu0 0.0
      %253 = vmatprep.subr.mxu0 0.0
      %254 = vmatpush1.xpose.msra.mxu0 0.0
      %255 = vmatprep.subr.mxu0 0.0
      %256 = vmatpush1.xpose.msra.mxu0 0.0
      %257 = vmatprep.subr.mxu0 0.0
      %258 = vmatpush1.xpose.msra.mxu0 0.0
      %259 = vmatprep.subr.mxu0 0.0
      %260 = vmatpush1.xpose.msra.mxu0 0.0
      %261 = vmatprep.subr.mxu0 0.0
      %262 = vmatpush1.xpose.msra.mxu0 0.0
      %263 = vmatprep.subr.mxu0 0.0
      %264 = vmatpush1.xpose.msra.mxu0 0.0
      %265 = vmatprep.subr.mxu0 0.0
      %266 = vmatpush1.xpose.msra.mxu0 0.0
      %267 = vmatprep.subr.mxu0 0.0
      %268 = vmatpush1.xpose.msra.mxu0 0.0
      %269 = vmatprep.subr.mxu0 0.0
      %270 = vmatpush1.xpose.msra.mxu0 0.0
      %271 = vmatprep.subr.mxu0 0.0
      %272 = vmatpush1.xpose.msra.mxu0 0.0
      %273 = vmatprep.mubr.f32.mxu0 0.0
      %274 = vmatmul.mubr.f32.gmra.mrb[0].mxu0 %v204
      %v275 = vpop.f32.mrb[0].mxu0
      %v276 = vadd.f32 0.0, %v275
      %v277 = vpop.f32.mrb[0].mxu0
      %278 = vdwg.mxu0
      %v279 = vmax.f32 %v276, 0.0
      %vm280 = vcmask 15360
      %v282 = vsel %vm280, %v279, 0
      %v285 = vsel %vm280, %v198, 0
      %v288 = vsel %vm280, %v199, 0
      %v291 = vsel %vm280, %v200, 0
      %v294 = vsel %vm280, %v201, 0
      %296 = vmatprep.subr.mxu0 0.0
      %297 = vmatpush1.xpose.msra.mxu0 %v285
      %298 = vmatprep.subr.mxu0 0.0
      %299 = vmatpush1.xpose.msra.mxu0 %v288
      %300 = vmatprep.subr.mxu0 0.0
      %301 = vmatpush1.xpose.msra.mxu0 %v291
      %302 = vmatprep.subr.mxu0 0.0
      %303 = vmatpush1.xpose.msra.mxu0 %v294
      %304 = vmatprep.subr.mxu0 0.0
      %305 = vmatpush1.xpose.msra.mxu0 0.0
      %306 = vmatprep.subr.mxu0 0.0
      %307 = vmatpush1.xpose.msra.mxu0 0.0
      %308 = vmatprep.subr.mxu0 0.0
      %309 = vmatpush1.xpose.msra.mxu0 0.0
      %310 = vmatprep.subr.mxu0 0.0
      %311 = vmatpush1.xpose.msra.mxu0 0.0
      %312 = vmatprep.subr.mxu0 0.0
      %313 = vmatpush1.xpose.msra.mxu0 0.0
      %314 = vmatprep.subr.mxu0 0.0
      %315 = vmatpush1.xpose.msra.mxu0 0.0
      %316 = vmatprep.subr.mxu0 0.0
      %317 = vmatpush1.xpose.msra.mxu0 0.0
      %318 = vmatprep.subr.mxu0 0.0
      %319 = vmatpush1.xpose.msra.mxu0 0.0
      %320 = vmatprep.subr.mxu0 0.0
      %321 = vmatpush1.xpose.msra.mxu0 0.0
      %322 = vmatprep.subr.mxu0 0.0
      %323 = vmatpush1.xpose.msra.mxu0 0.0
      %324 = vmatprep.subr.mxu0 0.0
      %325 = vmatpush1.xpose.msra.mxu0 0.0
      %326 = vmatprep.subr.mxu0 0.0
      %327 = vmatpush1.xpose.msra.mxu0 0.0
      %328 = vmatprep.subr.mxu0 0.0
      %329 = vmatpush1.xpose.msra.mxu0 0.0
      %330 = vmatprep.subr.mxu0 0.0
      %331 = vmatpush1.xpose.msra.mxu0 0.0
      %332 = vmatprep.subr.mxu0 0.0
      %333 = vmatpush1.xpose.msra.mxu0 0.0
      %334 = vmatprep.subr.mxu0 0.0
      %335 = vmatpush1.xpose.msra.mxu0 0.0
      %336 = vmatprep.subr.mxu0 0.0
      %337 = vmatpush1.xpose.msra.mxu0 0.0
      %338 = vmatprep.subr.mxu0 0.0
      %339 = vmatpush1.xpose.msra.mxu0 0.0
      %340 = vmatprep.subr.mxu0 0.0
      %341 = vmatpush1.xpose.msra.mxu0 0.0
      %342 = vmatprep.subr.mxu0 0.0
      %343 = vmatpush1.xpose.msra.mxu0 0.0
      %344 = vmatprep.subr.mxu0 0.0
      %345 = vmatpush1.xpose.msra.mxu0 0.0
      %346 = vmatprep.subr.mxu0 0.0
      %347 = vmatpush1.xpose.msra.mxu0 0.0
      %348 = vmatprep.subr.mxu0 0.0
      %349 = vmatpush1.xpose.msra.mxu0 0.0
      %350 = vmatprep.subr.mxu0 0.0
      %351 = vmatpush1.xpose.msra.mxu0 0.0
      %352 = vmatprep.subr.mxu0 0.0
      %353 = vmatpush1.xpose.msra.mxu0 0.0
      %354 = vmatprep.subr.mxu0 0.0
      %355 = vmatpush1.xpose.msra.mxu0 0.0
      %356 = vmatprep.subr.mxu0 0.0
      %357 = vmatpush1.xpose.msra.mxu0 0.0
      %358 = vmatprep.subr.mxu0 0.0
      %359 = vmatpush1.xpose.msra.mxu0 0.0
      %360 = vmatprep.mubr.f32.mxu0 0.0
      %361 = vmatmul.mubr.f32.gmra.mrb[0].mxu0 %v282
      %v362 = vpop.f32.mrb[0].mxu0
      %v363 = vadd.f32 0.0, %v362
      %v364 = vpop.f32.mrb[0].mxu0
      %365 = vdwg.mxu0
      %v366 = vxor.u32 %v363, 2147483648
      %v367 = vmul.f32 %v366, 1.442695
      %v368 = vpow.pop %v367
      %v369 = vadd.f32 %v368, 1.0
      %v370 = vrcp.pop %v369
      %v371 = vmul.f32 1.0, %v370
      %v373 = vsel %vm202, %v196, 0
      %375 = vmatprep.subr.mxu0 0.0
      %376 = vmatpush1.xpose.msra.mxu0 %v207
      %377 = vmatprep.subr.mxu0 0.0
      %378 = vmatpush1.xpose.msra.mxu0 0.0
      %379 = vmatprep.subr.mxu0 0.0
      %380 = vmatpush1.xpose.msra.mxu0 0.0
      %381 = vmatprep.subr.mxu0 0.0
      %382 = vmatpush1.xpose.msra.mxu0 0.0
      %383 = vmatprep.subr.mxu0 0.0
      %384 = vmatpush1.xpose.msra.mxu0 0.0
      %385 = vmatprep.subr.mxu0 0.0
      %386 = vmatpush1.xpose.msra.mxu0 0.0
      %387 = vmatprep.subr.mxu0 0.0
      %388 = vmatpush1.xpose.msra.mxu0 0.0
      %389 = vmatprep.subr.mxu0 0.0
      %390 = vmatpush1.xpose.msra.mxu0 0.0
      %391 = vmatprep.subr.mxu0 0.0
      %392 = vmatpush1.xpose.msra.mxu0 0.0
      %393 = vmatprep.subr.mxu0 0.0
      %394 = vmatpush1.xpose.msra.mxu0 0.0
      %395 = vmatprep.subr.mxu0 0.0
      %396 = vmatpush1.xpose.msra.mxu0 0.0
      %397 = vmatprep.subr.mxu0 0.0
      %398 = vmatpush1.xpose.msra.mxu0 0.0
      %399 = vmatprep.subr.mxu0 0.0
      %400 = vmatpush1.xpose.msra.mxu0 0.0
      %401 = vmatprep.subr.mxu0 0.0
      %402 = vmatpush1.xpose.msra.mxu0 0.0
      %403 = vmatprep.subr.mxu0 0.0
      %404 = vmatpush1.xpose.msra.mxu0 0.0
      %405 = vmatprep.subr.mxu0 0.0
      %406 = vmatpush1.xpose.msra.mxu0 0.0
      %407 = vmatprep.subr.mxu0 0.0
      %408 = vmatpush1.xpose.msra.mxu0 0.0
      %409 = vmatprep.subr.mxu0 0.0
      %410 = vmatpush1.xpose.msra.mxu0 0.0
      %411 = vmatprep.subr.mxu0 0.0
      %412 = vmatpush1.xpose.msra.mxu0 0.0
      %413 = vmatprep.subr.mxu0 0.0
      %414 = vmatpush1.xpose.msra.mxu0 0.0
      %415 = vmatprep.subr.mxu0 0.0
      %416 = vmatpush1.xpose.msra.mxu0 0.0
      %417 = vmatprep.subr.mxu0 0.0
      %418 = vmatpush1.xpose.msra.mxu0 0.0
      %419 = vmatprep.subr.mxu0 0.0
      %420 = vmatpush1.xpose.msra.mxu0 0.0
      %421 = vmatprep.subr.mxu0 0.0
      %422 = vmatpush1.xpose.msra.mxu0 0.0
      %423 = vmatprep.subr.mxu0 0.0
      %424 = vmatpush1.xpose.msra.mxu0 0.0
      %425 = vmatprep.subr.mxu0 0.0
      %426 = vmatpush1.xpose.msra.mxu0 0.0
      %427 = vmatprep.subr.mxu0 0.0
      %428 = vmatpush1.xpose.msra.mxu0 0.0
      %429 = vmatprep.subr.mxu0 0.0
      %430 = vmatpush1.xpose.msra.mxu0 0.0
      %431 = vmatprep.subr.mxu0 0.0
      %432 = vmatpush1.xpose.msra.mxu0 0.0
      %433 = vmatprep.subr.mxu0 0.0
      %434 = vmatpush1.xpose.msra.mxu0 0.0
      %435 = vmatprep.subr.mxu0 0.0
      %436 = vmatpush1.xpose.msra.mxu0 0.0
      %437 = vmatprep.subr.mxu0 0.0
      %438 = vmatpush1.xpose.msra.mxu0 0.0
      %439 = vmatprep.mubr.f32.mxu0 0.0
      %440 = vmatmul.mubr.f32.gmra.mrb[0].mxu0 %v373
      %v441 = vpop.f32.mrb[0].mxu0
      %v442 = vadd.f32 0.0, %v441
      %v443 = vpop.f32.mrb[0].mxu0
      %444 = vdwg.mxu0
      %v445 = vmax.f32 %v442, 0.0
      %v447 = vsel %vm280, %v445, 0
      %449 = vmatprep.subr.mxu0 0.0
      %450 = vmatpush1.xpose.msra.mxu0 %v285
      %451 = vmatprep.subr.mxu0 0.0
      %452 = vmatpush1.xpose.msra.mxu0 %v288
      %453 = vmatprep.subr.mxu0 0.0
      %454 = vmatpush1.xpose.msra.mxu0 %v291
      %455 = vmatprep.subr.mxu0 0.0
      %456 = vmatpush1.xpose.msra.mxu0 %v294
      %457 = vmatprep.subr.mxu0 0.0
      %458 = vmatpush1.xpose.msra.mxu0 0.0
      %459 = vmatprep.subr.mxu0 0.0
      %460 = vmatpush1.xpose.msra.mxu0 0.0
      %461 = vmatprep.subr.mxu0 0.0
      %462 = vmatpush1.xpose.msra.mxu0 0.0
      %463 = vmatprep.subr.mxu0 0.0
      %464 = vmatpush1.xpose.msra.mxu0 0.0
      %465 = vmatprep.subr.mxu0 0.0
      %466 = vmatpush1.xpose.msra.mxu0 0.0
      %467 = vmatprep.subr.mxu0 0.0
      %468 = vmatpush1.xpose.msra.mxu0 0.0
      %469 = vmatprep.subr.mxu0 0.0
      %470 = vmatpush1.xpose.msra.mxu0 0.0
      %471 = vmatprep.subr.mxu0 0.0
      %472 = vmatpush1.xpose.msra.mxu0 0.0
      %473 = vmatprep.subr.mxu0 0.0
      %474 = vmatpush1.xpose.msra.mxu0 0.0
      %475 = vmatprep.subr.mxu0 0.0
      %476 = vmatpush1.xpose.msra.mxu0 0.0
      %477 = vmatprep.subr.mxu0 0.0
      %478 = vmatpush1.xpose.msra.mxu0 0.0
      %479 = vmatprep.subr.mxu0 0.0
      %480 = vmatpush1.xpose.msra.mxu0 0.0
      %481 = vmatprep.subr.mxu0 0.0
      %482 = vmatpush1.xpose.msra.mxu0 0.0
      %483 = vmatprep.subr.mxu0 0.0
      %484 = vmatpush1.xpose.msra.mxu0 0.0
      %485 = vmatprep.subr.mxu0 0.0
      %486 = vmatpush1.xpose.msra.mxu0 0.0
      %487 = vmatprep.subr.mxu0 0.0
      %488 = vmatpush1.xpose.msra.mxu0 0.0
      %489 = vmatprep.subr.mxu0 0.0
      %490 = vmatpush1.xpose.msra.mxu0 0.0
      %491 = vmatprep.subr.mxu0 0.0
      %492 = vmatpush1.xpose.msra.mxu0 0.0
      %493 = vmatprep.subr.mxu0 0.0
      %494 = vmatpush1.xpose.msra.mxu0 0.0
      %495 = vmatprep.subr.mxu0 0.0
      %496 = vmatpush1.xpose.msra.mxu0 0.0
      %497 = vmatprep.subr.mxu0 0.0
      %498 = vmatpush1.xpose.msra.mxu0 0.0
      %499 = vmatprep.subr.mxu0 0.0
      %500 = vmatpush1.xpose.msra.mxu0 0.0
      %501 = vmatprep.subr.mxu0 0.0
      %502 = vmatpush1.xpose.msra.mxu0 0.0
      %503 = vmatprep.subr.mxu0 0.0
      %504 = vmatpush1.xpose.msra.mxu0 0.0
      %505 = vmatprep.subr.mxu0 0.0
      %506 = vmatpush1.xpose.msra.mxu0 0.0
      %507 = vmatprep.subr.mxu0 0.0
      %508 = vmatpush1.xpose.msra.mxu0 0.0
      %509 = vmatprep.subr.mxu0 0.0
      %510 = vmatpush1.xpose.msra.mxu0 0.0
      %511 = vmatprep.subr.mxu0 0.0
      %512 = vmatpush1.xpose.msra.mxu0 0.0
      %513 = vmatprep.mubr.f32.mxu0 0.0
      %514 = vmatmul.mubr.f32.gmra.mrb[0].mxu0 %v447
      %v515 = vpop.f32.mrb[0].mxu0
      %v516 = vadd.f32 0.0, %v515
      %v517 = vpop.f32.mrb[0].mxu0
      %518 = vdwg.mxu0
      %v519 = vxor.u32 %v516, 2147483648
      %v520 = vmul.f32 %v519, 1.442695
      %v521 = vpow.pop %v520
      %v522 = vadd.f32 %v521, 1.0
      %v523 = vrcp.pop %v522
      %v524 = vmul.f32 1.0, %v523
      %v525 = vadd.f32 %v371, %v524
      %v527 = vsel %vm202, %v525, 0
      %529 = vmatprep.subr.mxu0 0.0
      %530 = vmatpush1.xpose.msra.mxu0 %v207
      %531 = vmatprep.subr.mxu0 0.0
      %532 = vmatpush1.xpose.msra.mxu0 0.0
      %533 = vmatprep.subr.mxu0 0.0
      %534 = vmatpush1.xpose.msra.mxu0 0.0
      %535 = vmatprep.subr.mxu0 0.0
      %536 = vmatpush1.xpose.msra.mxu0 0.0
      %537 = vmatprep.subr.mxu0 0.0
      %538 = vmatpush1.xpose.msra.mxu0 0.0
      %539 = vmatprep.subr.mxu0 0.0
      %540 = vmatpush1.xpose.msra.mxu0 0.0
      %541 = vmatprep.subr.mxu0 0.0
      %542 = vmatpush1.xpose.msra.mxu0 0.0
      %543 = vmatprep.subr.mxu0 0.0
      %544 = vmatpush1.xpose.msra.mxu0 0.0
      %545 = vmatprep.subr.mxu0 0.0
      %546 = vmatpush1.xpose.msra.mxu0 0.0
      %547 = vmatprep.subr.mxu0 0.0
      %548 = vmatpush1.xpose.msra.mxu0 0.0
      %549 = vmatprep.subr.mxu0 0.0
      %550 = vmatpush1.xpose.msra.mxu0 0.0
      %551 = vmatprep.subr.mxu0 0.0
      %552 = vmatpush1.xpose.msra.mxu0 0.0
      %553 = vmatprep.subr.mxu0 0.0
      %554 = vmatpush1.xpose.msra.mxu0 0.0
      %555 = vmatprep.subr.mxu0 0.0
      %556 = vmatpush1.xpose.msra.mxu0 0.0
      %557 = vmatprep.subr.mxu0 0.0
      %558 = vmatpush1.xpose.msra.mxu0 0.0
      %559 = vmatprep.subr.mxu0 0.0
      %560 = vmatpush1.xpose.msra.mxu0 0.0
      %561 = vmatprep.subr.mxu0 0.0
      %562 = vmatpush1.xpose.msra.mxu0 0.0
      %563 = vmatprep.subr.mxu0 0.0
      %564 = vmatpush1.xpose.msra.mxu0 0.0
      %565 = vmatprep.subr.mxu0 0.0
      %566 = vmatpush1.xpose.msra.mxu0 0.0
      %567 = vmatprep.subr.mxu0 0.0
      %568 = vmatpush1.xpose.msra.mxu0 0.0
      %569 = vmatprep.subr.mxu0 0.0
      %570 = vmatpush1.xpose.msra.mxu0 0.0
      %571 = vmatprep.subr.mxu0 0.0
      %572 = vmatpush1.xpose.msra.mxu0 0.0
      %573 = vmatprep.subr.mxu0 0.0
      %574 = vmatpush1.xpose.msra.mxu0 0.0
      %575 = vmatprep.subr.mxu0 0.0
      %576 = vmatpush1.xpose.msra.mxu0 0.0
      %577 = vmatprep.subr.mxu0 0.0
      %578 = vmatpush1.xpose.msra.mxu0 0.0
      %579 = vmatprep.subr.mxu0 0.0
      %580 = vmatpush1.xpose.msra.mxu0 0.0
      %581 = vmatprep.subr.mxu0 0.0
      %582 = vmatpush1.xpose.msra.mxu0 0.0
      %583 = vmatprep.subr.mxu0 0.0
      %584 = vmatpush1.xpose.msra.mxu0 0.0
      %585 = vmatprep.subr.mxu0 0.0
      %586 = vmatpush1.xpose.msra.mxu0 0.0
      %587 = vmatprep.subr.mxu0 0.0
      %588 = vmatpush1.xpose.msra.mxu0 0.0
      %589 = vmatprep.subr.mxu0 0.0
      %590 = vmatpush1.xpose.msra.mxu0 0.0
      %591 = vmatprep.subr.mxu0 0.0
      %592 = vmatpush1.xpose.msra.mxu0 0.0
      %593 = vmatprep.mubr.f32.mxu0 0.0
      %594 = vmatmul.mubr.f32.gmra.mrb[0].mxu0 %v527
      %v595 = vpop.f32.mrb[0].mxu0
      %v596 = vadd.f32 0.0, %v595
      %v597 = vpop.f32.mrb[0].mxu0
      %598 = vdwg.mxu0
      %v599 = vmax.f32 %v596, 0.0
      %v601 = vsel %vm280, %v599, 0
      %603 = vmatprep.subr.mxu0 0.0
      %604 = vmatpush1.xpose.msra.mxu0 %v285
      %605 = vmatprep.subr.mxu0 0.0
      %606 = vmatpush1.xpose.msra.mxu0 %v288
      %607 = vmatprep.subr.mxu0 0.0
      %608 = vmatpush1.xpose.msra.mxu0 %v291
      %609 = vmatprep.subr.mxu0 0.0
      %610 = vmatpush1.xpose.msra.mxu0 %v294
      %611 = vmatprep.subr.mxu0 0.0
      %612 = vmatpush1.xpose.msra.mxu0 0.0
      %613 = vmatprep.subr.mxu0 0.0
      %614 = vmatpush1.xpose.msra.mxu0 0.0
      %615 = vmatprep.subr.mxu0 0.0
      %616 = vmatpush1.xpose.msra.mxu0 0.0
      %617 = vmatprep.subr.mxu0 0.0
      %618 = vmatpush1.xpose.msra.mxu0 0.0
      %619 = vmatprep.subr.mxu0 0.0
      %620 = vmatpush1.xpose.msra.mxu0 0.0
      %621 = vmatprep.subr.mxu0 0.0
      %622 = vmatpush1.xpose.msra.mxu0 0.0
      %623 = vmatprep.subr.mxu0 0.0
      %624 = vmatpush1.xpose.msra.mxu0 0.0
      %625 = vmatprep.subr.mxu0 0.0
      %626 = vmatpush1.xpose.msra.mxu0 0.0
      %627 = vmatprep.subr.mxu0 0.0
      %628 = vmatpush1.xpose.msra.mxu0 0.0
      %629 = vmatprep.subr.mxu0 0.0
      %630 = vmatpush1.xpose.msra.mxu0 0.0
      %631 = vmatprep.subr.mxu0 0.0
      %632 = vmatpush1.xpose.msra.mxu0 0.0
      %633 = vmatprep.subr.mxu0 0.0
      %634 = vmatpush1.xpose.msra.mxu0 0.0
      %635 = vmatprep.subr.mxu0 0.0
      %636 = vmatpush1.xpose.msra.mxu0 0.0
      %637 = vmatprep.subr.mxu0 0.0
      %638 = vmatpush1.xpose.msra.mxu0 0.0
      %639 = vmatprep.subr.mxu0 0.0
      %640 = vmatpush1.xpose.msra.mxu0 0.0
      %641 = vmatprep.subr.mxu0 0.0
      %642 = vmatpush1.xpose.msra.mxu0 0.0
      %643 = vmatprep.subr.mxu0 0.0
      %644 = vmatpush1.xpose.msra.mxu0 0.0
      %645 = vmatprep.subr.mxu0 0.0
      %646 = vmatpush1.xpose.msra.mxu0 0.0
      %647 = vmatprep.subr.mxu0 0.0
      %648 = vmatpush1.xpose.msra.mxu0 0.0
      %649 = vmatprep.subr.mxu0 0.0
      %650 = vmatpush1.xpose.msra.mxu0 0.0
      %651 = vmatprep.subr.mxu0 0.0
      %652 = vmatpush1.xpose.msra.mxu0 0.0
      %653 = vmatprep.subr.mxu0 0.0
      %654 = vmatpush1.xpose.msra.mxu0 0.0
      %655 = vmatprep.subr.mxu0 0.0
      %656 = vmatpush1.xpose.msra.mxu0 0.0
      %657 = vmatprep.subr.mxu0 0.0
      %658 = vmatpush1.xpose.msra.mxu0 0.0
      %659 = vmatprep.subr.mxu0 0.0
      %660 = vmatpush1.xpose.msra.mxu0 0.0
      %661 = vmatprep.subr.mxu0 0.0
      %662 = vmatpush1.xpose.msra.mxu0 0.0
      %663 = vmatprep.subr.mxu0 0.0
      %664 = vmatpush1.xpose.msra.mxu0 0.0
      %665 = vmatprep.subr.mxu0 0.0
      %666 = vmatpush1.xpose.msra.mxu0 0.0
      %667 = vmatprep.mubr.f32.mxu0 0.0
      %668 = vmatmul.mubr.f32.gmra.mrb[0].mxu0 %v601
      %v669 = vpop.f32.mrb[0].mxu0
      %v670 = vadd.f32 0.0, %v669
      %v671 = vpop.f32.mrb[0].mxu0
      %672 = vdwg.mxu0
      %v673 = vxor.u32 %v670, 2147483648
      %v674 = vmul.f32 %v673, 1.442695
      %v675 = vpow.pop %v674
      %v676 = vadd.f32 %v675, 1.0
      %v677 = vrcp.pop %v676
      %v678 = vmul.f32 1.0, %v677
      %679 = vst.msk [vmem:[#allocation4] sm:$0x3] %vm114, %v678
    $region21: #{tpu_custom_call.1} parent=1 // pred_fallthru
      _
    // Predicated region
    $region22: #{tpu_custom_call.1} parent=1 // pred_check
      _
    $region23: #{tpu_custom_call.1} parent=1 // pred_check_branch
      %681 = sbr.rel (0) target = $region25
    $region24: #{tpu_custom_call.1} parent=1 // pred_region
      %s683 = ssub.s32 32, 32
      %684 = vsyncadd [#allocation5], %s683
      %s686 = sshll.u32 [#allocation4], 4
      %s687 = int_to_ptr.vmem [resolvable:$true] %s686
      %689 = dma.vmem_to_hbm [thread:$0]  %s687, 32, %s3, [#allocation5]
    $region25: #{tpu_custom_call.1} parent=1 // pred_fallthru
      _
    // Predicated region
    $region26: #{tpu_custom_call.1} parent=1 // pred_check
      _
    $region27: #{tpu_custom_call.1} parent=1 // pred_check_branch
      %691 = sbr.rel (0) target = $region29
    $region28: #{tpu_custom_call.1} parent=1 // pred_region
      %692 = dma.done [#allocation5], 32
    $region29: #{tpu_custom_call.1} parent=1 // pred_fallthru
      _
    %693 = vsyncpa [#allocation5], 1

</llo_original>
